<compile_context>
chip_gen: v7x
topology: tpu7x:2x2x1
jax: 0.10.0
libtpu: 0.0.40
codegen_flags: <defaults>
</compile_context>

<pallas_src>
import jax
import jax.numpy as jnp
from jax.experimental import pallas as pl
from jax.experimental.pallas import tpu as pltpu

IN_FEATURES = 121
HIDDEN = 50


def simplenet_kernel(x_ref, w1t_ref, b1_ref, w2_ref, b2_ref, o_ref):
    # x_ref:   (Bt, 121)  natural batch-major tile
    # w1t_ref: (121, 50)  fc1 weight, pre-transposed (in, out)
    # b1_ref:  (1, 50)    fc1 bias (broadcast over batch rows)
    # w2_ref:  (1, 50)    fc2 weight as a row (broadcast over batch rows)
    # b2_ref:  (1, 1)     fc2 bias
    # o_ref:   (Bt, 1)    output tile
    h = jnp.dot(x_ref[...], w1t_ref[...], preferred_element_type=jnp.float32)
    h = jnp.maximum(h + b1_ref[...], 0.0)                       # ReLU after fc1
    # fc2 as VPU multiply + lane reduction (avoids a degenerate 50x1 MXU op)
    y = jnp.sum(h * w2_ref[...], axis=-1, keepdims=True) + b2_ref[...]
    o_ref[...] = jnp.maximum(y, 0.0).astype(o_ref.dtype)        # ReLU after fc2


def simplenet_forward(x, w1, b1, w2, b2, *, b_tile=4096):
    """x: (B, 121); w1: (50, 121); b1: (50,); w2: (50,); b2: () -> returns (B, 1)."""
    B, D = x.shape
    H = w1.shape[0]
    assert D == IN_FEATURES and H == HIDDEN

    x = x.astype(jnp.float32)

    # Shrink the tile for small batches; second-last block dim must be a multiple of 8.
    bt = min(b_tile, max(8, ((B + 7) // 8) * 8))
    grid = (pl.cdiv(B, bt),)

    # One-time tiny weight re-layouts (resident in VMEM across all grid steps).
    w1t = w1.T.astype(jnp.float32)                 # (121, 50)
    b1r = b1.reshape(1, H).astype(jnp.float32)     # (1, 50)
    w2r = w2.reshape(1, H).astype(jnp.float32)     # (1, 50)
    b2c = jnp.reshape(b2, (1, 1)).astype(jnp.float32)

    cost = pl.CostEstimate(
        flops=2 * B * D * H + 2 * B * H,
        bytes_accessed=B * D * 4 + B * 4 + (D * H + 2 * H + 1) * 4,
        transcendentals=0,
    )

    out = pl.pallas_call(
        simplenet_kernel,
        out_shape=jax.ShapeDtypeStruct((B, 1), jnp.float32),
        grid_spec=pltpu.PrefetchScalarGridSpec(
            num_scalar_prefetch=0,
            grid=grid,
            in_specs=[
                pl.BlockSpec((bt, D), lambda i: (i, 0)),   # x tile, natural layout
                pl.BlockSpec((D, H), lambda i: (0, 0)),    # W1^T, resident
                pl.BlockSpec((1, H), lambda i: (0, 0)),    # b1 row
                pl.BlockSpec((1, H), lambda i: (0, 0)),    # w2 row
                pl.BlockSpec((1, 1), lambda i: (0, 0)),    # b2
            ],
            out_specs=pl.BlockSpec((bt, 1), lambda i: (i, 0)),
        ),
        compiler_params=pltpu.CompilerParams(
            dimension_semantics=("parallel",),
        ),
        cost_estimate=cost,
    )(x, w1t, b1r, w2r, b2c)

    return out


def init_params(key):
    # Deterministic init mimicking PyTorch's U(-1/sqrt(fan_in), 1/sqrt(fan_in)).
    k1, k2, k3, k4 = jax.random.split(key, 4)
    lim1 = 1.0 / jnp.sqrt(float(IN_FEATURES))   # fc1 fan_in = 121
    lim2 = 1.0 / jnp.sqrt(float(HIDDEN))        # fc2 fan_in = 50
    w1 = jax.random.uniform(k1, (HIDDEN, IN_FEATURES), jnp.float32, -lim1, lim1)  # (out, in)
    b1 = jax.random.uniform(k2, (HIDDEN,), jnp.float32, -lim1, lim1)
    w2 = jax.random.uniform(k3, (HIDDEN,), jnp.float32, -lim2, lim2)              # fc2 row
    b2 = jax.random.uniform(k4, (), jnp.float32, -lim2, lim2)
    return w1, b1, w2, b2


if __name__ == "__main__":
    key = jax.random.PRNGKey(0)
    kx, kp = jax.random.split(key)

    B = 8  # small demo batch; ragged-tail blocks are handled by Pallas masking
    x = jax.random.normal(kx, (B, IN_FEATURES), jnp.float32)
    w1, b1, w2, b2 = init_params(kp)

    out = simplenet_forward(x, w1, b1, w2, b2)
    out = jax.block_until_ready(out)

    # Reference check in plain JAX (same math, same params).
    ref = jnp.maximum(jnp.maximum(x @ w1.T + b1, 0.0) @ w2.reshape(HIDDEN, 1) + b2, 0.0)
    assert out.shape == (B, 1)
    assert jnp.allclose(out, ref, atol=1e-5, rtol=1e-5), (out, ref)

    print("KERNEL_OK")
</pallas_src>

<mosaic_0001>
module attributes {stable_mosaic.version = 11 : i64} {
  func.func @simplenet_kernel(%arg0: i32, %arg1: memref<8x121xf32, #tpu.memory_space<vmem>>, %arg2: memref<121x50xf32, #tpu.memory_space<vmem>>, %arg3: memref<1x50xf32, #tpu.memory_space<vmem>>, %arg4: memref<1x50xf32, #tpu.memory_space<vmem>>, %arg5: memref<1x1xf32, #tpu.memory_space<vmem>>, %arg6: memref<8x1xf32, #tpu.memory_space<vmem>>) attributes {dimension_semantics = [#tpu.dimension_semantics<parallel>], iteration_bounds = array<i64: 1>, scalar_prefetch = 0 : i64, scratch_operands = 0 : i64, tpu.core_type = #tpu.core_type<tc>, window_params = [{transform_indices = @transform_0, window_bounds = array<i64: 8, 121>}, {pipeline_mode = #tpu.pipeline_mode<synchronous>, transform_indices = @transform_1, window_bounds = array<i64: 121, 50>}, {pipeline_mode = #tpu.pipeline_mode<synchronous>, transform_indices = @transform_2, window_bounds = array<i64: 1, 50>}, {pipeline_mode = #tpu.pipeline_mode<synchronous>, transform_indices = @transform_3, window_bounds = array<i64: 1, 50>}, {pipeline_mode = #tpu.pipeline_mode<synchronous>, transform_indices = @transform_4, window_bounds = array<i64: 1, 1>}, {transform_indices = @transform_5, window_bounds = array<i64: 8, 1>}]} {
    %c0 = arith.constant 0 : index
    %c0_0 = arith.constant 0 : index
    %0 = vector.load %arg1[%c0, %c0_0] : memref<8x121xf32, #tpu.memory_space<vmem>>, vector<8x121xf32>
    %c0_1 = arith.constant 0 : index
    %c0_2 = arith.constant 0 : index
    %1 = vector.load %arg2[%c0_1, %c0_2] : memref<121x50xf32, #tpu.memory_space<vmem>>, vector<121x50xf32>
    %cst = arith.constant dense<0.000000e+00> : vector<8x50xf32>
    %2 = tpu.matmul %0, %1, %cst {dimension_numbers = #tpu.dot_dimension_numbers<[1], [0], [0], [1], [0, 0, 1, 1], [], []>} : vector<8x121xf32>, vector<121x50xf32>, vector<8x50xf32> -> vector<8x50xf32>
    %c0_3 = arith.constant 0 : index
    %c0_4 = arith.constant 0 : index
    %3 = vector.load %arg3[%c0_3, %c0_4] : memref<1x50xf32, #tpu.memory_space<vmem>>, vector<1x50xf32>
    %4 = vector.broadcast %3 : vector<1x50xf32> to vector<8x50xf32>
    %5 = arith.addf %2, %4 : vector<8x50xf32>
    %cst_5 = arith.constant 0.000000e+00 : f32
    %6 = vector.broadcast %cst_5 : f32 to vector<8x50xf32>
    %7 = arith.maximumf %5, %6 : vector<8x50xf32>
    %c0_6 = arith.constant 0 : index
    %c0_7 = arith.constant 0 : index
    %8 = vector.load %arg4[%c0_6, %c0_7] : memref<1x50xf32, #tpu.memory_space<vmem>>, vector<1x50xf32>
    %9 = vector.broadcast %8 : vector<1x50xf32> to vector<8x50xf32>
    %10 = arith.mulf %7, %9 : vector<8x50xf32>
    %cst_8 = arith.constant dense<0.000000e+00> : vector<8xf32>
    %11 = vector.multi_reduction <add>, %10, %cst_8 [1] : vector<8x50xf32> to vector<8xf32>
    %12 = vector.shape_cast %11 : vector<8xf32> to vector<8x1xf32>
    %c0_9 = arith.constant 0 : index
    %c0_10 = arith.constant 0 : index
    %13 = vector.load %arg5[%c0_9, %c0_10] : memref<1x1xf32, #tpu.memory_space<vmem>>, vector<1x1xf32>
    %14 = vector.broadcast %13 : vector<1x1xf32> to vector<8x1xf32>
    %15 = arith.addf %12, %14 : vector<8x1xf32>
    %cst_11 = arith.constant 0.000000e+00 : f32
    %16 = vector.broadcast %cst_11 : f32 to vector<8x1xf32>
    %17 = arith.maximumf %15, %16 : vector<8x1xf32>
    %c0_12 = arith.constant 0 : index
    %c0_13 = arith.constant 0 : index
    %18 = vector.load %arg6[%c0_12, %c0_13] : memref<8x1xf32, #tpu.memory_space<vmem>>, vector<8x1xf32>
    tpu.vector_store %arg6[%c0_12, %c0_13], %17 {strides = array<i32>} : memref<8x1xf32, #tpu.memory_space<vmem>>, vector<8x1xf32>,
    return
  }
  func.func @transform_0(%arg0: i32) -> (i32, i32) {
    %c0_i32 = arith.constant 0 : i32
    %c0_i32_0 = arith.constant 0 : i32
    return %arg0, %c0_i32 : i32, i32
  }
  func.func @transform_1(%arg0: i32) -> (i32, i32) {
    %c0_i32 = arith.constant 0 : i32
    %c0_i32_0 = arith.constant 0 : i32
    %c0_i32_1 = arith.constant 0 : i32
    return %c0_i32, %c0_i32_0 : i32, i32
  }
  func.func @transform_2(%arg0: i32) -> (i32, i32) {
    %c0_i32 = arith.constant 0 : i32
    %c0_i32_0 = arith.constant 0 : i32
    %c0_i32_1 = arith.constant 0 : i32
    return %c0_i32, %c0_i32_0 : i32, i32
  }
  func.func @transform_3(%arg0: i32) -> (i32, i32) {
    %c0_i32 = arith.constant 0 : i32
    %c0_i32_0 = arith.constant 0 : i32
    %c0_i32_1 = arith.constant 0 : i32
    return %c0_i32, %c0_i32_0 : i32, i32
  }
  func.func @transform_4(%arg0: i32) -> (i32, i32) {
    %c0_i32 = arith.constant 0 : i32
    %c0_i32_0 = arith.constant 0 : i32
    %c0_i32_1 = arith.constant 0 : i32
    return %c0_i32, %c0_i32_0 : i32, i32
  }
  func.func @transform_5(%arg0: i32) -> (i32, i32) {
    %c0_i32 = arith.constant 0 : i32
    %c0_i32_0 = arith.constant 0 : i32
    return %arg0, %c0_i32 : i32, i32
  }
}

</mosaic_0001>

<llo_original>
// kernel: tpu_custom_call.1
$region0: #{tpu_custom_call.1}
  #allocation0 [shape = 'u32[]', space=smem, size = 0x4, offset = 0x4, fixed_abs, tag = 'smem constant byte address 0x4 - core index']
  #allocation1 [shape = 'u32[144,128]{1,0:T(1,128)}', space=vmem, size = 0x12000, scoped, tag = 'internal scratch']
  #allocation2 [shape = 'f32[1,1]{1,0:T(1,128)S(1)}', space=vmem, size = 0x200, scoped, tag = 'scoped memory for tpu_custom_call.1']
  %s0 = inlined_call_operand.vmem [shape: f32[8,121], index: 0, kind: input, shape index: {}]
  %s1 = inlined_call_operand.vmem [shape: f32[121,50], index: 1, kind: input, shape index: {}]
  %s2 = inlined_call_operand.vmem [shape: f32[1,50], index: 2, kind: input, shape index: {}]
  %s3 = inlined_call_operand.vmem [shape: f32[1,50], index: 3, kind: input, shape index: {}]
  %s4 = inlined_call_operand.<no memory space> [shape: f32[1,1], index: 4, kind: input, shape index: {}]
  %s5 = inlined_call_operand.vmem [shape: f32[8,1], index: 5, kind: output, shape index: {}]
  %s6 = sld [smem:[#allocation0]]
  $region30: #{tpu_custom_call.1} parent=0
    _
  %s8 = ssub.s32 1, %s6
  %s9 = scalar_select 0, %s8, %s6
  %v10 = vstv %s4
  %11 = vst [vmem:[#allocation2] sm:$0x1] %v10
  // Predicated region
  $region2: #{tpu_custom_call.1} parent=0 // pred_check
    _
  $region3: #{tpu_custom_call.1} parent=0 // pred_check_branch
    %13 = sbr.rel (0) target = $region5
  $region4: #{tpu_custom_call.1} parent=0 // pred_region
    _
  $region5: #{tpu_custom_call.1} parent=0 // pred_fallthru
    _
  // Predicated region
  $region6: #{tpu_custom_call.1} parent=0 // pred_check
    _
  $region7: #{tpu_custom_call.1} parent=0 // pred_check_branch
    %15 = sbr.rel (0) target = $region9
  $region8: #{tpu_custom_call.1} parent=0 // pred_region
    _
  $region9: #{tpu_custom_call.1} parent=0 // pred_fallthru
    _
  // Predicated region
  $region10: #{tpu_custom_call.1} parent=0 // pred_check
    _
  $region11: #{tpu_custom_call.1} parent=0 // pred_check_branch
    %17 = sbr.rel (0) target = $region13
  $region12: #{tpu_custom_call.1} parent=0 // pred_region
    _
  $region13: #{tpu_custom_call.1} parent=0 // pred_fallthru
    _
  // Predicated region
  $region14: #{tpu_custom_call.1} parent=0 // pred_check
    _
  $region15: #{tpu_custom_call.1} parent=0 // pred_check_branch
    %19 = sbr.rel (0) target = $region17
  $region16: #{tpu_custom_call.1} parent=0 // pred_region
    _
  $region17: #{tpu_custom_call.1} parent=0 // pred_fallthru
    _
  // Predicated region
  $region18: #{tpu_custom_call.1} parent=0 // pred_check
    _
  $region19: #{tpu_custom_call.1} parent=0 // pred_check_branch
    %21 = sbr.rel (0) target = $region21
  $region20: #{tpu_custom_call.1} parent=0 // pred_region
    _
  $region21: #{tpu_custom_call.1} parent=0 // pred_fallthru
    _
  %v22 = vld [vmem:[%s0] sm:$0xff]
  %v23 = vld [vmem:[%s1] sm:$0xff]
  %v24 = vld [vmem:[%s1 + $0x8] sm:$0xff]
  %v25 = vld [vmem:[%s1 + $0x10] sm:$0xff]
  %v26 = vld [vmem:[%s1 + $0x18] sm:$0xff]
  %v27 = vld [vmem:[%s1 + $0x20] sm:$0xff]
  %v28 = vld [vmem:[%s1 + $0x28] sm:$0xff]
  %v29 = vld [vmem:[%s1 + $0x30] sm:$0xff]
  %v30 = vld [vmem:[%s1 + $0x38] sm:$0xff]
  %v31 = vld [vmem:[%s1 + $0x40] sm:$0xff]
  %v32 = vld [vmem:[%s1 + $0x48] sm:$0xff]
  %v33 = vld [vmem:[%s1 + $0x50] sm:$0xff]
  %v34 = vld [vmem:[%s1 + $0x58] sm:$0xff]
  %v35 = vld [vmem:[%s1 + $0x60] sm:$0xff]
  %v36 = vld [vmem:[%s1 + $0x68] sm:$0xff]
  %v37 = vld [vmem:[%s1 + $0x70] sm:$0xff]
  %v38 = vld [vmem:[%s1 + $0x78] sm:$0x1]
  %v39 = vld [vmem:[%s2] sm:$0x1]
  %v41 = vlaneseq
  %v42 = vshrl.u32 %v41, 7
  %v43 = vsub.s32 0, %v42
  %v44 = vrot.slane %v39, %v43
  %vm46 = vcmask 990208
  %v48 = vsel %vm46, %v22, 0
  %vm50 = vcmask 1040384
  %v52 = vsel %vm50, %v38, 0
  %54 = vmatprep.subr.mxu0 0.0
  %55 = vmatpush1.msra.mxu0 %v23
  %56 = vmatprep.subr.mxu0 0.0
  %57 = vmatpush1.msra.mxu0 %v24
  %58 = vmatprep.subr.mxu0 0.0
  %59 = vmatpush1.msra.mxu0 %v25
  %60 = vmatprep.subr.mxu0 0.0
  %61 = vmatpush1.msra.mxu0 %v26
  %62 = vmatprep.subr.mxu0 0.0
  %63 = vmatpush1.msra.mxu0 %v27
  %64 = vmatprep.subr.mxu0 0.0
  %65 = vmatpush1.msra.mxu0 %v28
  %66 = vmatprep.subr.mxu0 0.0
  %67 = vmatpush1.msra.mxu0 %v29
  %68 = vmatprep.subr.mxu0 0.0
  %69 = vmatpush1.msra.mxu0 %v30
  %70 = vmatprep.subr.mxu0 0.0
  %71 = vmatpush1.msra.mxu0 %v31
  %72 = vmatprep.subr.mxu0 0.0
  %73 = vmatpush1.msra.mxu0 %v32
  %74 = vmatprep.subr.mxu0 0.0
  %75 = vmatpush1.msra.mxu0 %v33
  %76 = vmatprep.subr.mxu0 0.0
  %77 = vmatpush1.msra.mxu0 %v34
  %78 = vmatprep.subr.mxu0 0.0
  %79 = vmatpush1.msra.mxu0 %v35
  %80 = vmatprep.subr.mxu0 0.0
  %81 = vmatpush1.msra.mxu0 %v36
  %82 = vmatprep.subr.mxu0 0.0
  %83 = vmatpush1.msra.mxu0 %v37
  %84 = vmatprep.subr.mxu0 0.0
  %85 = vmatpush1.msra.mxu0 %v52
  %86 = vmatprep.subr.mxu0 0.0
  %87 = vmatpush1.msra.mxu0 0.0
  %88 = vmatprep.subr.mxu0 0.0
  %89 = vmatpush1.msra.mxu0 0.0
  %90 = vmatprep.subr.mxu0 0.0
  %91 = vmatpush1.msra.mxu0 0.0
  %92 = vmatprep.subr.mxu0 0.0
  %93 = vmatpush1.msra.mxu0 0.0
  %94 = vmatprep.subr.mxu0 0.0
  %95 = vmatpush1.msra.mxu0 0.0
  %96 = vmatprep.subr.mxu0 0.0
  %97 = vmatpush1.msra.mxu0 0.0
  %98 = vmatprep.subr.mxu0 0.0
  %99 = vmatpush1.msra.mxu0 0.0
  %100 = vmatprep.subr.mxu0 0.0
  %101 = vmatpush1.msra.mxu0 0.0
  %102 = vmatprep.subr.mxu0 0.0
  %103 = vmatpush1.msra.mxu0 0.0
  %104 = vmatprep.subr.mxu0 0.0
  %105 = vmatpush1.msra.mxu0 0.0
  %106 = vmatprep.subr.mxu0 0.0
  %107 = vmatpush1.msra.mxu0 0.0
  %108 = vmatprep.subr.mxu0 0.0
  %109 = vmatpush1.msra.mxu0 0.0
  %110 = vmatprep.subr.mxu0 0.0
  %111 = vmatpush1.msra.mxu0 0.0
  %112 = vmatprep.subr.mxu0 0.0
  %113 = vmatpush1.msra.mxu0 0.0
  %114 = vmatprep.subr.mxu0 0.0
  %115 = vmatpush1.msra.mxu0 0.0
  %116 = vmatprep.subr.mxu0 0.0
  %117 = vmatpush1.msra.mxu0 0.0
  %118 = vmatprep.mubr.f32.mxu0 0.0
  %119 = vmatmul.mubr.f32.gmra.mrb[0].mxu0 %v48
  %v120 = vpop.f32.mrb[0].mxu0
  %v121 = vadd.f32 %v44, %v120
  %v122 = vpop.f32.mrb[0].mxu0
  %123 = vdwg.mxu0
  %v124 = vmax.f32 %v121, 0.0
  %v125 = vld [vmem:[%s3] sm:$0x1]
  %v127 = vlaneseq
  %v128 = vshrl.u32 %v127, 7
  %v129 = vsub.s32 0, %v128
  %v130 = vrot.slane %v125, %v129
  %v132 = vmul.f32 %v124, %v130
  %vm133 = vcmask 408576
  %v134 = vsel %vm133, %v132, 0.0
  %135 = vadd.xlane.f32.xlu0 %v134
  %v136 = vpop.xlane.xlu0 %135
  %v137 = vld [vmem:[#allocation2] sm:$0x1]
  %v139 = vlaneseq
  %v140 = vshrl.u32 %v139, 7
  %v141 = vsub.s32 0, %v140
  %v142 = vrot.slane %v137, %v141
  %v144 = vadd.f32 %v136, %v142
  %v145 = vmax.f32 %v144, 0.0
  %vm146 = vcmask 7168
  %147 = vst.msk [vmem:[%s5] sm:$0xff] %vm146, %v145
  // Predicated region
  $region22: #{tpu_custom_call.1} parent=0 // pred_check
    _
  $region23: #{tpu_custom_call.1} parent=0 // pred_check_branch
    %149 = sbr.rel (0) target = $region25
  $region24: #{tpu_custom_call.1} parent=0 // pred_region
    _
  $region25: #{tpu_custom_call.1} parent=0 // pred_fallthru
    _
  // Predicated region
  $region26: #{tpu_custom_call.1} parent=0 // pred_check
    _
  $region27: #{tpu_custom_call.1} parent=0 // pred_check_branch
    %151 = sbr.rel (0) target = $region29
  $region28: #{tpu_custom_call.1} parent=0 // pred_region
    _
  $region29: #{tpu_custom_call.1} parent=0 // pred_fallthru
    _

</llo_original>
